<compile_context>
chip_gen: v7x
topology: tpu7x:2x2x1
jax: 0.10.0
libtpu: 0.0.40
codegen_flags: <defaults>
</compile_context>

<pallas_src>
import functools
import math

import jax
import jax.numpy as jnp
from jax.experimental import pallas as pl
from jax.experimental.pallas import tpu as pltpu

LANE = 128      # vreg lane width
SUBLANE = 8     # f32 sublane count
TM_CAP = 1024   # max rows per grid step (VMEM stays at a few MiB even here)


def _round_up(v, m):
    return (v + m - 1) // m * m


def mlp_kernel(x_ref, w1_ref, b_ref, w2_ref, w3_ref, o_ref):
    """One batch tile of the 3-layer MLP; all (bf16) weights resident in VMEM."""
    h_pad = w2_ref.shape[1]
    n_pad = w3_ref.shape[1]

    # Layer 1: bf16 x bf16 on the MXU, f32 accumulation; bias/ReLU in f32.
    h1 = jnp.dot(x_ref[...], w1_ref[...], preferred_element_type=jnp.float32)
    h1 = jnp.maximum(h1 + b_ref[0:1, :h_pad], 0.0)

    # Layer 2.
    h2 = jnp.dot(h1.astype(jnp.bfloat16), w2_ref[...],
                 preferred_element_type=jnp.float32)
    h2 = jnp.maximum(h2 + b_ref[1:2, :h_pad], 0.0)

    # Output layer (columns beyond out_dim are zero-padded in w3/b3).
    out = jnp.dot(h2.astype(jnp.bfloat16), w3_ref[...],
                  preferred_element_type=jnp.float32)
    out = out + b_ref[2:3, :n_pad]

    o_ref[...] = out.astype(o_ref.dtype)          # lane-dense (tm, n_pad) store


def prepare_params(w1, b1, w2, b2, w3, b3, weight_dtype=jnp.bfloat16):
    """Pad weights to lane-aligned output widths, cast to bf16, pack biases.

    Weights are expected in (in_features, out_features) layout (y = x @ W),
    biases as (out_features,).  Done once, outside the per-call path.
    Padded rows/columns are zeros, so results are unchanged.
    """
    in_dim, hid = w1.shape
    out_dim = w3.shape[1]
    h_pad = _round_up(hid, LANE)
    n_pad = _round_up(out_dim, LANE)
    bias_cols = max(h_pad, n_pad)

    def pad2(a, rows, cols):
        return jnp.pad(a, ((0, rows - a.shape[0]), (0, cols - a.shape[1])))

    # Keep the contraction dim of w1 at its natural size (no K pad needed).
    w1p = pad2(w1.astype(jnp.float32), in_dim, h_pad).astype(weight_dtype)
    w2p = pad2(w2.astype(jnp.float32), h_pad, h_pad).astype(weight_dtype)
    w3p = pad2(w3.astype(jnp.float32), h_pad, n_pad).astype(weight_dtype)

    biases = jnp.stack([
        pad2(b1.reshape(1, -1).astype(jnp.float32), 1, bias_cols)[0],
        pad2(b2.reshape(1, -1).astype(jnp.float32), 1, bias_cols)[0],
        pad2(b3.reshape(1, -1).astype(jnp.float32), 1, bias_cols)[0],
    ])                                                # (3, bias_cols) f32
    return (w1p, w2p, w3p, biases), out_dim


@functools.partial(jax.jit, static_argnames=("out_dim",))
def mlp_forward(x, params, *, out_dim):
    w1p, w2p, w3p, bp = params
    in_dim = w1p.shape[0]
    h_pad = w2p.shape[1]
    n_pad = w3p.shape[1]

    # Flatten trailing dims (in_channel * feature_sz).  The module's `.float()`
    # is folded into the intentional bf16 quantization of the MXU operands.
    x = x.reshape(x.shape[0], -1).astype(jnp.bfloat16)
    batch = x.shape[0]
    assert x.shape[1] == in_dim, (x.shape, in_dim)

    # Row tile: sublane-aligned, capped at TM_CAP.  Whenever there are >= 16
    # rows, split into at least 2 grid steps so the parallel batch axis can
    # shard across v7x's two TensorCores (harmless on v5e/v6e).
    batch8 = _round_up(batch, SUBLANE)
    if batch8 >= 2 * SUBLANE:
        tm = min(TM_CAP, _round_up(batch8 // 2, SUBLANE))
    else:
        tm = batch8
    batch_pad = _round_up(batch, tm)
    if batch_pad != batch:
        x = jnp.pad(x, ((0, batch_pad - batch), (0, 0)))   # rows only, bf16

    out = pl.pallas_call(
        mlp_kernel,
        out_shape=jax.ShapeDtypeStruct((batch_pad, n_pad), jnp.float32),
        grid=(batch_pad // tm,),
        in_specs=[
            pl.BlockSpec((tm, in_dim), lambda i: (i, 0)),          # x tile (bf16)
            pl.BlockSpec((in_dim, h_pad), lambda i: (0, 0)),       # w1 (resident)
            pl.BlockSpec((3, bp.shape[1]), lambda i: (0, 0)),      # packed biases
            pl.BlockSpec((h_pad, h_pad), lambda i: (0, 0)),        # w2 (resident)
            pl.BlockSpec((h_pad, n_pad), lambda i: (0, 0)),        # w3 (resident)
        ],
        out_specs=pl.BlockSpec((tm, n_pad), lambda i: (i, 0)),
        compiler_params=pltpu.CompilerParams(
            dimension_semantics=("parallel",)),
    )(x, w1p, bp, w2p, w3p)

    # Drop batch / lane padding outside the kernel.
    return out[:batch, :out_dim]


def init_linear(key, fan_in, fan_out):
    """PyTorch-style init U(-1/sqrt(fan_in), 1/sqrt(fan_in)); weight as (in, out)."""
    kw, kb = jax.random.split(key)
    bound = 1.0 / math.sqrt(fan_in)
    w = jax.random.uniform(kw, (fan_in, fan_out), jnp.float32, -bound, bound)
    b = jax.random.uniform(kb, (fan_out,), jnp.float32, -bound, bound)
    return w, b


def reference_mlp_bf16(x, w1, b1, w2, b2, w3, b3):
    """Pure-JAX reference with the same intentional bf16 operand quantization."""
    q = lambda a: a.astype(jnp.bfloat16)
    x = q(x.reshape(x.shape[0], -1).astype(jnp.float32))
    h1 = jnp.maximum(
        jnp.dot(x, q(w1), preferred_element_type=jnp.float32) + b1, 0.0)
    h2 = jnp.maximum(
        jnp.dot(q(h1), q(w2), preferred_element_type=jnp.float32) + b2, 0.0)
    return jnp.dot(q(h2), q(w3), preferred_element_type=jnp.float32) + b3


if __name__ == "__main__":
    # Module defaults: out_dim=14, in_channel=1, feature_sz=70, hidden_dim=256
    out_dim, in_channel, feature_sz, hidden_dim = 14, 1, 70, 256
    in_dim = in_channel * feature_sz

    root = jax.random.PRNGKey(0)
    kx, k1, k2, k3, kx2 = jax.random.split(root, 5)

    w1, b1 = init_linear(k1, in_dim, hidden_dim)
    w2, b2 = init_linear(k2, hidden_dim, hidden_dim)
    w3, b3 = init_linear(k3, hidden_dim, out_dim)
    params, n_out = prepare_params(w1, b1, w2, b2, w3, b3,
                                   weight_dtype=jnp.bfloat16)

    # Case 1: tiny batch (single grid step).
    batch = 8
    x = jax.random.normal(kx, (batch, in_dim), jnp.float32)
    out = jax.block_until_ready(mlp_forward(x, params, out_dim=n_out))
    assert out.shape == (batch, out_dim), out.shape
    ref = reference_mlp_bf16(x, w1, b1, w2, b2, w3, b3)
    assert jnp.allclose(out, ref, atol=1e-3, rtol=1e-3), "mismatch (batch=8)"

    # Case 2: non-aligned batch exercising row padding + multi-step parallel grid.
    batch2 = 40
    x2 = jax.random.normal(kx2, (batch2, in_dim), jnp.float32)
    out2 = jax.block_until_ready(mlp_forward(x2, params, out_dim=n_out))
    assert out2.shape == (batch2, out_dim), out2.shape
    ref2 = reference_mlp_bf16(x2, w1, b1, w2, b2, w3, b3)
    assert jnp.allclose(out2, ref2, atol=1e-3, rtol=1e-3), "mismatch (batch=40)"

    print("KERNEL_OK")
</pallas_src>

<mosaic_0001>
module attributes {stable_mosaic.version = 11 : i64} {
  func.func @mlp_kernel(%arg0: i32, %arg1: memref<8x70xbf16, #tpu.memory_space<vmem>>, %arg2: memref<70x256xbf16, #tpu.memory_space<vmem>>, %arg3: memref<3x256xf32, #tpu.memory_space<vmem>>, %arg4: memref<256x256xbf16, #tpu.memory_space<vmem>>, %arg5: memref<256x128xbf16, #tpu.memory_space<vmem>>, %arg6: memref<8x128xf32, #tpu.memory_space<vmem>>) attributes {dimension_semantics = [#tpu.dimension_semantics<parallel>], iteration_bounds = array<i64: 1>, scalar_prefetch = 0 : i64, scratch_operands = 0 : i64, tpu.core_type = #tpu.core_type<tc>, window_params = [{transform_indices = @transform_0, window_bounds = array<i64: 8, 70>}, {pipeline_mode = #tpu.pipeline_mode<synchronous>, transform_indices = @transform_1, window_bounds = array<i64: 70, 256>}, {pipeline_mode = #tpu.pipeline_mode<synchronous>, transform_indices = @transform_2, window_bounds = array<i64: 3, 256>}, {pipeline_mode = #tpu.pipeline_mode<synchronous>, transform_indices = @transform_3, window_bounds = array<i64: 256, 256>}, {pipeline_mode = #tpu.pipeline_mode<synchronous>, transform_indices = @transform_4, window_bounds = array<i64: 256, 128>}, {transform_indices = @transform_5, window_bounds = array<i64: 8, 128>}]} {
    %c0 = arith.constant 0 : index
    %c0_0 = arith.constant 0 : index
    %0 = vector.load %arg1[%c0, %c0_0] : memref<8x70xbf16, #tpu.memory_space<vmem>>, vector<8x70xbf16>
    %c0_1 = arith.constant 0 : index
    %c0_2 = arith.constant 0 : index
    %1 = vector.load %arg2[%c0_1, %c0_2] : memref<70x256xbf16, #tpu.memory_space<vmem>>, vector<70x256xbf16>
    %cst = arith.constant dense<0.000000e+00> : vector<8x256xf32>
    %2 = tpu.matmul %0, %1, %cst {dimension_numbers = #tpu.dot_dimension_numbers<[1], [0], [0], [1], [0, 0, 1, 1], [], []>} : vector<8x70xbf16>, vector<70x256xbf16>, vector<8x256xf32> -> vector<8x256xf32>
    %c0_3 = arith.constant 0 : index
    %c0_4 = arith.constant 0 : index
    %3 = vector.load %arg3[%c0_3, %c0_4] : memref<3x256xf32, #tpu.memory_space<vmem>>, vector<1x256xf32>
    %4 = vector.broadcast %3 : vector<1x256xf32> to vector<8x256xf32>
    %5 = arith.addf %2, %4 : vector<8x256xf32>
    %cst_5 = arith.constant 0.000000e+00 : f32
    %6 = vector.broadcast %cst_5 : f32 to vector<8x256xf32>
    %7 = arith.maximumf %5, %6 : vector<8x256xf32>
    %8 = arith.truncf %7 : vector<8x256xf32> to vector<8x256xbf16>
    %c0_6 = arith.constant 0 : index
    %c0_7 = arith.constant 0 : index
    %9 = vector.load %arg4[%c0_6, %c0_7] : memref<256x256xbf16, #tpu.memory_space<vmem>>, vector<256x256xbf16>
    %cst_8 = arith.constant dense<0.000000e+00> : vector<8x256xf32>
    %10 = tpu.matmul %8, %9, %cst_8 {dimension_numbers = #tpu.dot_dimension_numbers<[1], [0], [0], [1], [0, 0, 1, 1], [], []>} : vector<8x256xbf16>, vector<256x256xbf16>, vector<8x256xf32> -> vector<8x256xf32>
    %c1 = arith.constant 1 : index
    %c0_9 = arith.constant 0 : index
    %11 = vector.load %arg3[%c1, %c0_9] : memref<3x256xf32, #tpu.memory_space<vmem>>, vector<1x256xf32>
    %12 = vector.broadcast %11 : vector<1x256xf32> to vector<8x256xf32>
    %13 = arith.addf %10, %12 : vector<8x256xf32>
    %cst_10 = arith.constant 0.000000e+00 : f32
    %14 = vector.broadcast %cst_10 : f32 to vector<8x256xf32>
    %15 = arith.maximumf %13, %14 : vector<8x256xf32>
    %16 = arith.truncf %15 : vector<8x256xf32> to vector<8x256xbf16>
    %c0_11 = arith.constant 0 : index
    %c0_12 = arith.constant 0 : index
    %17 = vector.load %arg5[%c0_11, %c0_12] : memref<256x128xbf16, #tpu.memory_space<vmem>>, vector<256x128xbf16>
    %cst_13 = arith.constant dense<0.000000e+00> : vector<8x128xf32>
    %18 = tpu.matmul %16, %17, %cst_13 {dimension_numbers = #tpu.dot_dimension_numbers<[1], [0], [0], [1], [0, 0, 1, 1], [], []>} : vector<8x256xbf16>, vector<256x128xbf16>, vector<8x128xf32> -> vector<8x128xf32>
    %c2 = arith.constant 2 : index
    %c0_14 = arith.constant 0 : index
    %19 = vector.load %arg3[%c2, %c0_14] : memref<3x256xf32, #tpu.memory_space<vmem>>, vector<1x128xf32>
    %20 = vector.broadcast %19 : vector<1x128xf32> to vector<8x128xf32>
    %21 = arith.addf %18, %20 : vector<8x128xf32>
    %c0_15 = arith.constant 0 : index
    %c0_16 = arith.constant 0 : index
    %22 = vector.load %arg6[%c0_15, %c0_16] : memref<8x128xf32, #tpu.memory_space<vmem>>, vector<8x128xf32>
    tpu.vector_store %arg6[%c0_15, %c0_16], %21 {strides = array<i32>} : memref<8x128xf32, #tpu.memory_space<vmem>>, vector<8x128xf32>,
    return
  }
  func.func @transform_0(%arg0: i32) -> (i32, i32) {
    %c0_i32 = arith.constant 0 : i32
    %c0_i32_0 = arith.constant 0 : i32
    return %arg0, %c0_i32 : i32, i32
  }
  func.func @transform_1(%arg0: i32) -> (i32, i32) {
    %c0_i32 = arith.constant 0 : i32
    %c0_i32_0 = arith.constant 0 : i32
    %c0_i32_1 = arith.constant 0 : i32
    return %c0_i32, %c0_i32_0 : i32, i32
  }
  func.func @transform_2(%arg0: i32) -> (i32, i32) {
    %c0_i32 = arith.constant 0 : i32
    %c0_i32_0 = arith.constant 0 : i32
    %c0_i32_1 = arith.constant 0 : i32
    return %c0_i32, %c0_i32_0 : i32, i32
  }
  func.func @transform_3(%arg0: i32) -> (i32, i32) {
    %c0_i32 = arith.constant 0 : i32
    %c0_i32_0 = arith.constant 0 : i32
    %c0_i32_1 = arith.constant 0 : i32
    return %c0_i32, %c0_i32_0 : i32, i32
  }
  func.func @transform_4(%arg0: i32) -> (i32, i32) {
    %c0_i32 = arith.constant 0 : i32
    %c0_i32_0 = arith.constant 0 : i32
    %c0_i32_1 = arith.constant 0 : i32
    return %c0_i32, %c0_i32_0 : i32, i32
  }
  func.func @transform_5(%arg0: i32) -> (i32, i32) {
    %c0_i32 = arith.constant 0 : i32
    %c0_i32_0 = arith.constant 0 : i32
    return %arg0, %c0_i32 : i32, i32
  }
}

</mosaic_0001>

<llo_original>
// kernel: mlp_forward.1
$region0: #{mlp_forward.1}
  #allocation0 [shape = 'u32[]', space=smem, size = 0x4, offset = 0x4, fixed_abs, tag = 'smem constant byte address 0x4 - core index']
  #allocation1 [shape = 'u32[144,128]{1,0:T(1,128)}', space=vmem, size = 0x12000, scoped, tag = 'internal scratch']
  %s0 = inlined_call_operand.vmem [shape: bf16[8,70], index: 0, kind: input, shape index: {}]
  %s1 = inlined_call_operand.hbm [shape: bf16[70,256], index: 1, kind: input, shape index: {}]
  %s2 = inlined_call_operand.vmem [shape: f32[3,256], index: 2, kind: input, shape index: {}]
  %s3 = inlined_call_operand.hbm [shape: bf16[256,256], index: 3, kind: input, shape index: {}]
  %s4 = inlined_call_operand.hbm [shape: bf16[256,128], index: 4, kind: input, shape index: {}]
  %s5 = inlined_call_operand.hbm [shape: f32[8,128], index: 5, kind: output, shape index: {}]
  %s6 = sld [smem:[#allocation0]]
  $region42: #{mlp_forward.1} parent=0
    _
  %s8 = ssub.s32 1, %s6
  %s9 = scalar_select 0, %s8, %s6
  $region1: #{mlp_forward.1} parent=0
    #allocation2 [shape = 'u8[36864]{0}', space=vmem, size = 0x9000, scoped, tag = 'input window, operand 1, single buffered']
    #allocation3 [shape = 's32[1]{0}', space=sflag, size = 0x4, scoped, tag = 'scoped memory for mlp_forward.1']
    #allocation4 [shape = 's32[1]{0}', space=sflag, size = 0x4, scoped, tag = 'scoped memory for mlp_forward.1']
    #allocation5 [shape = 'u8[131072]{0}', space=vmem, size = 0x20000, scoped, tag = 'input window, operand 3, single buffered']
    #allocation6 [shape = 's32[1]{0}', space=sflag, size = 0x4, scoped, tag = 'scoped memory for mlp_forward.1']
    #allocation7 [shape = 'u8[65536]{0}', space=vmem, size = 0x10000, scoped, tag = 'input window, operand 4, single buffered']
    #allocation8 [shape = 'u8[4096]{0}', space=vmem, size = 0x1000, scoped, tag = 'output window, operand 0, single buffered']
    %10 = vsyncpa [#allocation3], 0
    %11 = vsyncpa [#allocation6], 0
    %12 = vsyncpa [#allocation4], 0
    // Predicated region
    $region2: #{mlp_forward.1} parent=1 // pred_check
      _
    $region3: #{mlp_forward.1} parent=1 // pred_check_branch
      %14 = sbr.rel (0) target = $region5
    $region4: #{mlp_forward.1} parent=1 // pred_region
      _
    $region5: #{mlp_forward.1} parent=1 // pred_fallthru
      _
    // Predicated region
    $region6: #{mlp_forward.1} parent=1 // pred_check
      _
    $region7: #{mlp_forward.1} parent=1 // pred_check_branch
      %16 = sbr.rel (0) target = $region9
    $region8: #{mlp_forward.1} parent=1 // pred_region
      %s18 = ssub.s32 1152, 1152
      %19 = vsyncadd [#allocation3], %s18
      %s20 = sshll.u32 [#allocation2], 4
      %s21 = int_to_ptr.vmem [resolvable:$true] %s20
      %26 = dma.hbm_to_vmem [thread:$0]  %s1, 1152, %s21, [#allocation3], 128, 128, 8
    $region9: #{mlp_forward.1} parent=1 // pred_fallthru
      _
    // Predicated region
    $region10: #{mlp_forward.1} parent=1 // pred_check
      _
    $region11: #{mlp_forward.1} parent=1 // pred_check_branch
      %28 = sbr.rel (0) target = $region13
    $region12: #{mlp_forward.1} parent=1 // pred_region
      _
    $region13: #{mlp_forward.1} parent=1 // pred_fallthru
      _
    // Predicated region
    $region14: #{mlp_forward.1} parent=1 // pred_check
      _
    $region15: #{mlp_forward.1} parent=1 // pred_check_branch
      %30 = sbr.rel (0) target = $region17
    $region16: #{mlp_forward.1} parent=1 // pred_region
      %s32 = ssub.s32 4096, 4096
      %33 = vsyncadd [#allocation6], %s32
      %s34 = sshll.u32 [#allocation5], 4
      %s35 = int_to_ptr.vmem [resolvable:$true] %s34
      %40 = dma.hbm_to_vmem [thread:$0]  %s3, 4096, %s35, [#allocation6], 128, 128, 8
    $region17: #{mlp_forward.1} parent=1 // pred_fallthru
      _
    // Predicated region
    $region18: #{mlp_forward.1} parent=1 // pred_check
      _
    $region19: #{mlp_forward.1} parent=1 // pred_check_branch
      %42 = sbr.rel (0) target = $region21
    $region20: #{mlp_forward.1} parent=1 // pred_region
      %s44 = ssub.s32 2048, 2048
      %45 = vsyncadd [#allocation6], %s44
      %s46 = sshll.u32 [#allocation7], 4
      %s47 = int_to_ptr.vmem [resolvable:$true] %s46
      %52 = dma.hbm_to_vmem [thread:$0]  %s4, 2048, %s47, [#allocation6], 64, 64, 4
    $region21: #{mlp_forward.1} parent=1 // pred_fallthru
      _
    // Predicated region
    $region22: #{mlp_forward.1} parent=1 // pred_check
      _
    $region23: #{mlp_forward.1} parent=1 // pred_check_branch
      %54 = sbr.rel (0) target = $region25
    $region24: #{mlp_forward.1} parent=1 // pred_region
      %55 = dma.done [#allocation3], 1152
    $region25: #{mlp_forward.1} parent=1 // pred_fallthru
      _
    // Predicated region
    $region26: #{mlp_forward.1} parent=1 // pred_check
      _
    $region27: #{mlp_forward.1} parent=1 // pred_check_branch
      %57 = sbr.rel (0) target = $region29
    $region28: #{mlp_forward.1} parent=1 // pred_region
      %58 = dma.done [#allocation6], 4096
    $region29: #{mlp_forward.1} parent=1 // pred_fallthru
      _
    // Predicated region
    $region30: #{mlp_forward.1} parent=1 // pred_check
      _
    $region31: #{mlp_forward.1} parent=1 // pred_check_branch
      %60 = sbr.rel (0) target = $region33
    $region32: #{mlp_forward.1} parent=1 // pred_region
      %61 = dma.done [#allocation6], 2048
    $region33: #{mlp_forward.1} parent=1 // pred_fallthru
      _
    %v63 = vld [vmem:[%s0] sm:$0xf]
    %v64 = vld [vmem:[#allocation2] sm:$0xff]
    %v65 = vld [vmem:[#allocation2 + $0x8] sm:$0xff]
    %v66 = vld [vmem:[#allocation2 + $0x10] sm:$0xff]
    %v67 = vld [vmem:[#allocation2 + $0x18] sm:$0xff]
    %v68 = vld [vmem:[#allocation2 + $0x20] sm:$0xff]
    %v69 = vld [vmem:[#allocation2 + $0x28] sm:$0xff]
    %v70 = vld [vmem:[#allocation2 + $0x30] sm:$0xff]
    %v71 = vld [vmem:[#allocation2 + $0x38] sm:$0xff]
    %v72 = vld [vmem:[#allocation2 + $0x40] sm:$0x77]
    %v73 = vld [vmem:[%s2] ss:$4 sm:$0x3]
    %v75 = vlaneseq
    %v76 = vshrl.u32 %v75, 7
    %v77 = vsub.s32 0, %v76
    %v78 = vrot.slane %v73, %v77
    %v79 = vlaneseq
    %v80 = vshrl.u32 %v79, 7
    %v81 = vsub.s32 1, %v80
    %v82 = vrot.slane %v73, %v81
    %v94 = vunpack.c.l.b16 %v64
    %v95 = vunpack.c.h.b16 %v64
    %v96 = vunpack.c.l.b16 %v65
    %v97 = vunpack.c.h.b16 %v65
    %v98 = vunpack.c.l.b16 %v66
    %v99 = vunpack.c.h.b16 %v66
    %v100 = vunpack.c.l.b16 %v67
    %v101 = vunpack.c.h.b16 %v67
    %v102 = vunpack.c.l.b16 %v68
    %v103 = vunpack.c.h.b16 %v68
    %v104 = vunpack.c.l.b16 %v69
    %v105 = vunpack.c.h.b16 %v69
    %v106 = vunpack.c.l.b16 %v70
    %v107 = vunpack.c.h.b16 %v70
    %v108 = vunpack.c.l.b16 %v71
    %v109 = vunpack.c.h.b16 %v71
    %v110 = vunpack.c.l.b16 %v72
    %v111 = vunpack.c.h.b16 %v72
    %v112 = vpack.c.b16 %v96, %v94
    %v113 = vpack.c.b16 %v97, %v95
    %v114 = vpack.c.b16 %v100, %v98
    %v115 = vpack.c.b16 %v101, %v99
    %v116 = vpack.c.b16 %v104, %v102
    %v117 = vpack.c.b16 %v105, %v103
    %v118 = vpack.c.b16 %v108, %v106
    %v119 = vpack.c.b16 %v109, %v107
    %v120 = vpack.c.b16 %v110, %v110
    %v121 = vpack.c.b16 %v111, %v111
    %vm130 = vcmask 572416
    %v132 = vsel %vm130, %v63, 0
    %vm134 = vcmask 1042432
    %v136 = vsel %vm134, %v120, 0
    %v139 = vsel %vm134, %v121, 0
    %141 = vmatprep.subr.bf16.mxu0 %v113
    %142 = vmatpush1.bf16.msra.mxu0 %v112
    %143 = vmatprep.subr.bf16.mxu0 %v115
    %144 = vmatpush1.bf16.msra.mxu0 %v114
    %145 = vmatprep.subr.bf16.mxu0 %v117
    %146 = vmatpush1.bf16.msra.mxu0 %v116
    %147 = vmatprep.subr.bf16.mxu0 %v119
    %148 = vmatpush1.bf16.msra.mxu0 %v118
    %149 = vmatprep.subr.bf16.mxu0 %v139
    %150 = vmatpush1.bf16.msra.mxu0 %v136
    %151 = vmatprep.subr.bf16.mxu0 0
    %152 = vmatpush1.bf16.msra.mxu0 0
    %153 = vmatprep.subr.bf16.mxu0 0
    %154 = vmatpush1.bf16.msra.mxu0 0
    %155 = vmatprep.subr.bf16.mxu0 0
    %156 = vmatpush1.bf16.msra.mxu0 0
    %157 = vmatprep.subr.bf16.mxu0 0
    %158 = vmatpush1.bf16.msra.mxu0 0
    %159 = vmatprep.subr.bf16.mxu0 0
    %160 = vmatpush1.bf16.msra.mxu0 0
    %161 = vmatprep.subr.bf16.mxu0 0
    %162 = vmatpush1.bf16.msra.mxu0 0
    %163 = vmatprep.subr.bf16.mxu0 0
    %164 = vmatpush1.bf16.msra.mxu0 0
    %165 = vmatprep.subr.bf16.mxu0 0
    %166 = vmatpush1.bf16.msra.mxu0 0
    %167 = vmatprep.subr.bf16.mxu0 0
    %168 = vmatpush1.bf16.msra.mxu0 0
    %169 = vmatprep.subr.bf16.mxu0 0
    %170 = vmatpush1.bf16.msra.mxu0 0
    %171 = vmatprep.subr.bf16.mxu0 0
    %172 = vmatpush1.bf16.msra.mxu0 0
    %173 = vmatprep.mubr.bf16.mxu0 0
    %174 = vmatmul.mubr.bf16.gmra.mrb[0].mxu0 %v132
    %v175 = vpop.f32.mrb[0].mxu0
    %v176 = vadd.f32 %v78, %v175
    %v177 = vpop.f32.mrb[0].mxu0
    %v178 = vadd.f32 %v82, %v177
    %v179 = vpop.f32.mrb[0].mxu0
    %v180 = vpop.f32.mrb[0].mxu0
    %181 = vdwg.mxu0
    %v182 = vmax.f32 %v176, 0.0
    %v183 = vmax.f32 %v178, 0.0
    %v184 = vpack.c.bf16 %v182, %v182
    %v185 = vpack.c.bf16 %v183, %v183
    %v186 = vld [vmem:[#allocation5] sm:$0xff]
    %v187 = vld [vmem:[#allocation5 + $0x8] sm:$0xff]
    %v188 = vld [vmem:[#allocation5 + $0x10] sm:$0xff]
    %v189 = vld [vmem:[#allocation5 + $0x18] sm:$0xff]
    %v190 = vld [vmem:[#allocation5 + $0x20] sm:$0xff]
    %v191 = vld [vmem:[#allocation5 + $0x28] sm:$0xff]
    %v192 = vld [vmem:[#allocation5 + $0x30] sm:$0xff]
    %v193 = vld [vmem:[#allocation5 + $0x38] sm:$0xff]
    %v194 = vld [vmem:[#allocation5 + $0x40] sm:$0xff]
    %v195 = vld [vmem:[#allocation5 + $0x48] sm:$0xff]
    %v196 = vld [vmem:[#allocation5 + $0x50] sm:$0xff]
    %v197 = vld [vmem:[#allocation5 + $0x58] sm:$0xff]
    %v198 = vld [vmem:[#allocation5 + $0x60] sm:$0xff]
    %v199 = vld [vmem:[#allocation5 + $0x68] sm:$0xff]
    %v200 = vld [vmem:[#allocation5 + $0x70] sm:$0xff]
    %v201 = vld [vmem:[#allocation5 + $0x78] sm:$0xff]
    %v202 = vld [vmem:[#allocation5 + $0x80] sm:$0xff]
    %v203 = vld [vmem:[#allocation5 + $0x88] sm:$0xff]
    %v204 = vld [vmem:[#allocation5 + $0x90] sm:$0xff]
    %v205 = vld [vmem:[#allocation5 + $0x98] sm:$0xff]
    %v206 = vld [vmem:[#allocation5 + $0xa0] sm:$0xff]
    %v207 = vld [vmem:[#allocation5 + $0xa8] sm:$0xff]
    %v208 = vld [vmem:[#allocation5 + $0xb0] sm:$0xff]
    %v209 = vld [vmem:[#allocation5 + $0xb8] sm:$0xff]
    %v210 = vld [vmem:[#allocation5 + $0xc0] sm:$0xff]
    %v211 = vld [vmem:[#allocation5 + $0xc8] sm:$0xff]
    %v212 = vld [vmem:[#allocation5 + $0xd0] sm:$0xff]
    %v213 = vld [vmem:[#allocation5 + $0xd8] sm:$0xff]
    %v214 = vld [vmem:[#allocation5 + $0xe0] sm:$0xff]
    %v215 = vld [vmem:[#allocation5 + $0xe8] sm:$0xff]
    %v216 = vld [vmem:[#allocation5 + $0xf0] sm:$0xff]
    %v217 = vld [vmem:[#allocation5 + $0xf8] sm:$0xff]
    %s218 = scalar_lea.vmem %s2, 1
    %v219 = vld [vmem:[%s218] ss:$4 sm:$0x3]
    %v221 = vlaneseq
    %v222 = vshrl.u32 %v221, 7
    %v223 = vsub.s32 0, %v222
    %v224 = vrot.slane %v219, %v223
    %v225 = vlaneseq
    %v226 = vshrl.u32 %v225, 7
    %v227 = vsub.s32 1, %v226
    %v228 = vrot.slane %v219, %v227
    %v263 = vunpack.c.l.b16 %v186
    %v264 = vunpack.c.h.b16 %v186
    %v265 = vunpack.c.l.b16 %v187
    %v266 = vunpack.c.h.b16 %v187
    %v267 = vunpack.c.l.b16 %v188
    %v268 = vunpack.c.h.b16 %v188
    %v269 = vunpack.c.l.b16 %v189
    %v270 = vunpack.c.h.b16 %v189
    %v271 = vunpack.c.l.b16 %v190
    %v272 = vunpack.c.h.b16 %v190
    %v273 = vunpack.c.l.b16 %v191
    %v274 = vunpack.c.h.b16 %v191
    %v275 = vunpack.c.l.b16 %v192
    %v276 = vunpack.c.h.b16 %v192
    %v277 = vunpack.c.l.b16 %v193
    %v278 = vunpack.c.h.b16 %v193
    %v279 = vunpack.c.l.b16 %v194
    %v280 = vunpack.c.h.b16 %v194
    %v281 = vunpack.c.l.b16 %v195
    %v282 = vunpack.c.h.b16 %v195
    %v283 = vunpack.c.l.b16 %v196
    %v284 = vunpack.c.h.b16 %v196
    %v285 = vunpack.c.l.b16 %v197
    %v286 = vunpack.c.h.b16 %v197
    %v287 = vunpack.c.l.b16 %v198
    %v288 = vunpack.c.h.b16 %v198
    %v289 = vunpack.c.l.b16 %v199
    %v290 = vunpack.c.h.b16 %v199
    %v291 = vunpack.c.l.b16 %v200
    %v292 = vunpack.c.h.b16 %v200
    %v293 = vunpack.c.l.b16 %v201
    %v294 = vunpack.c.h.b16 %v201
    %v295 = vunpack.c.l.b16 %v202
    %v296 = vunpack.c.h.b16 %v202
    %v297 = vunpack.c.l.b16 %v203
    %v298 = vunpack.c.h.b16 %v203
    %v299 = vunpack.c.l.b16 %v204
    %v300 = vunpack.c.h.b16 %v204
    %v301 = vunpack.c.l.b16 %v205
    %v302 = vunpack.c.h.b16 %v205
    %v303 = vunpack.c.l.b16 %v206
    %v304 = vunpack.c.h.b16 %v206
    %v305 = vunpack.c.l.b16 %v207
    %v306 = vunpack.c.h.b16 %v207
    %v307 = vunpack.c.l.b16 %v208
    %v308 = vunpack.c.h.b16 %v208
    %v309 = vunpack.c.l.b16 %v209
    %v310 = vunpack.c.h.b16 %v209
    %v311 = vunpack.c.l.b16 %v210
    %v312 = vunpack.c.h.b16 %v210
    %v313 = vunpack.c.l.b16 %v211
    %v314 = vunpack.c.h.b16 %v211
    %v315 = vunpack.c.l.b16 %v212
    %v316 = vunpack.c.h.b16 %v212
    %v317 = vunpack.c.l.b16 %v213
    %v318 = vunpack.c.h.b16 %v213
    %v319 = vunpack.c.l.b16 %v214
    %v320 = vunpack.c.h.b16 %v214
    %v321 = vunpack.c.l.b16 %v215
    %v322 = vunpack.c.h.b16 %v215
    %v323 = vunpack.c.l.b16 %v216
    %v324 = vunpack.c.h.b16 %v216
    %v325 = vunpack.c.l.b16 %v217
    %v326 = vunpack.c.h.b16 %v217
    %v327 = vpack.c.b16 %v265, %v263
    %v328 = vpack.c.b16 %v266, %v264
    %v329 = vpack.c.b16 %v269, %v267
    %v330 = vpack.c.b16 %v270, %v268
    %v331 = vpack.c.b16 %v273, %v271
    %v332 = vpack.c.b16 %v274, %v272
    %v333 = vpack.c.b16 %v277, %v275
    %v334 = vpack.c.b16 %v278, %v276
    %v335 = vpack.c.b16 %v281, %v279
    %v336 = vpack.c.b16 %v282, %v280
    %v337 = vpack.c.b16 %v285, %v283
    %v338 = vpack.c.b16 %v286, %v284
    %v339 = vpack.c.b16 %v289, %v287
    %v340 = vpack.c.b16 %v290, %v288
    %v341 = vpack.c.b16 %v293, %v291
    %v342 = vpack.c.b16 %v294, %v292
    %v343 = vpack.c.b16 %v297, %v295
    %v344 = vpack.c.b16 %v298, %v296
    %v345 = vpack.c.b16 %v301, %v299
    %v346 = vpack.c.b16 %v302, %v300
    %v347 = vpack.c.b16 %v305, %v303
    %v348 = vpack.c.b16 %v306, %v304
    %v349 = vpack.c.b16 %v309, %v307
    %v350 = vpack.c.b16 %v310, %v308
    %v351 = vpack.c.b16 %v313, %v311
    %v352 = vpack.c.b16 %v314, %v312
    %v353 = vpack.c.b16 %v317, %v315
    %v354 = vpack.c.b16 %v318, %v316
    %v355 = vpack.c.b16 %v321, %v319
    %v356 = vpack.c.b16 %v322, %v320
    %v357 = vpack.c.b16 %v325, %v323
    %v358 = vpack.c.b16 %v326, %v324
    %391 = vmatprep.subr.bf16.mxu0 %v328
    %392 = vmatpush1.bf16.msra.mxu0 %v327
    %393 = vmatprep.subr.bf16.mxu0 %v330
    %394 = vmatpush1.bf16.msra.mxu0 %v329
    %395 = vmatprep.subr.bf16.mxu0 %v332
    %396 = vmatpush1.bf16.msra.mxu0 %v331
    %397 = vmatprep.subr.bf16.mxu0 %v334
    %398 = vmatpush1.bf16.msra.mxu0 %v333
    %399 = vmatprep.subr.bf16.mxu0 %v336
    %400 = vmatpush1.bf16.msra.mxu0 %v335
    %401 = vmatprep.subr.bf16.mxu0 %v338
    %402 = vmatpush1.bf16.msra.mxu0 %v337
    %403 = vmatprep.subr.bf16.mxu0 %v340
    %404 = vmatpush1.bf16.msra.mxu0 %v339
    %405 = vmatprep.subr.bf16.mxu0 %v342
    %406 = vmatpush1.bf16.msra.mxu0 %v341
    %407 = vmatprep.subr.bf16.mxu0 %v344
    %408 = vmatpush1.bf16.msra.mxu0 %v343
    %409 = vmatprep.subr.bf16.mxu0 %v346
    %410 = vmatpush1.bf16.msra.mxu0 %v345
    %411 = vmatprep.subr.bf16.mxu0 %v348
    %412 = vmatpush1.bf16.msra.mxu0 %v347
    %413 = vmatprep.subr.bf16.mxu0 %v350
    %414 = vmatpush1.bf16.msra.mxu0 %v349
    %415 = vmatprep.subr.bf16.mxu0 %v352
    %416 = vmatpush1.bf16.msra.mxu0 %v351
    %417 = vmatprep.subr.bf16.mxu0 %v354
    %418 = vmatpush1.bf16.msra.mxu0 %v353
    %419 = vmatprep.subr.bf16.mxu0 %v356
    %420 = vmatpush1.bf16.msra.mxu0 %v355
    %421 = vmatprep.subr.bf16.mxu0 %v358
    %422 = vmatpush1.bf16.msra.mxu0 %v357
    %423 = vmatprep.mubr.bf16.mxu0 %v185
    %424 = vmatmul.mubr.bf16.gmra.mrb[0].mxu0 %v184
    %v425 = vpop.f32.mrb[0].mxu0
    %v426 = vadd.f32 %v224, %v425
    %v427 = vpop.f32.mrb[0].mxu0
    %v428 = vadd.f32 %v228, %v427
    %v429 = vpop.f32.mrb[0].mxu0
    %v430 = vpop.f32.mrb[0].mxu0
    %431 = vdwg.mxu0
    %v432 = vmax.f32 %v426, 0.0
    %v433 = vmax.f32 %v428, 0.0
    %v434 = vpack.c.bf16 %v432, %v432
    %v435 = vpack.c.bf16 %v433, %v433
    %v436 = vld [vmem:[#allocation7] sm:$0xf]
    %v437 = vld [vmem:[#allocation7 + $0x4] sm:$0xf]
    %v438 = vld [vmem:[#allocation7 + $0x8] sm:$0xf]
    %v439 = vld [vmem:[#allocation7 + $0xc] sm:$0xf]
    %v440 = vld [vmem:[#allocation7 + $0x10] sm:$0xf]
    %v441 = vld [vmem:[#allocation7 + $0x14] sm:$0xf]
    %v442 = vld [vmem:[#allocation7 + $0x18] sm:$0xf]
    %v443 = vld [vmem:[#allocation7 + $0x1c] sm:$0xf]
    %v444 = vld [vmem:[#allocation7 + $0x20] sm:$0xf]
    %v445 = vld [vmem:[#allocation7 + $0x24] sm:$0xf]
    %v446 = vld [vmem:[#allocation7 + $0x28] sm:$0xf]
    %v447 = vld [vmem:[#allocation7 + $0x2c] sm:$0xf]
    %v448 = vld [vmem:[#allocation7 + $0x30] sm:$0xf]
    %v449 = vld [vmem:[#allocation7 + $0x34] sm:$0xf]
    %v450 = vld [vmem:[#allocation7 + $0x38] sm:$0xf]
    %v451 = vld [vmem:[#allocation7 + $0x3c] sm:$0xf]
    %v452 = vld [vmem:[#allocation7 + $0x40] sm:$0xf]
    %v453 = vld [vmem:[#allocation7 + $0x44] sm:$0xf]
    %v454 = vld [vmem:[#allocation7 + $0x48] sm:$0xf]
    %v455 = vld [vmem:[#allocation7 + $0x4c] sm:$0xf]
    %v456 = vld [vmem:[#allocation7 + $0x50] sm:$0xf]
    %v457 = vld [vmem:[#allocation7 + $0x54] sm:$0xf]
    %v458 = vld [vmem:[#allocation7 + $0x58] sm:$0xf]
    %v459 = vld [vmem:[#allocation7 + $0x5c] sm:$0xf]
    %v460 = vld [vmem:[#allocation7 + $0x60] sm:$0xf]
    %v461 = vld [vmem:[#allocation7 + $0x64] sm:$0xf]
    %v462 = vld [vmem:[#allocation7 + $0x68] sm:$0xf]
    %v463 = vld [vmem:[#allocation7 + $0x6c] sm:$0xf]
    %v464 = vld [vmem:[#allocation7 + $0x70] sm:$0xf]
    %v465 = vld [vmem:[#allocation7 + $0x74] sm:$0xf]
    %v466 = vld [vmem:[#allocation7 + $0x78] sm:$0xf]
    %v467 = vld [vmem:[#allocation7 + $0x7c] sm:$0xf]
    %v468 = vld [vmem:[%s2 + $0x2] sm:$0x1]
    %v469 = vlaneseq
    %v470 = vshrl.u32 %v469, 7
    %v471 = vsub.s32 0, %v470
    %v472 = vrot.slane %v468, %v471
    %v505 = vunpack.c.l.b16 %v436
    %v506 = vunpack.c.l.b16 %v437
    %v507 = vunpack.c.l.b16 %v438
    %v508 = vunpack.c.l.b16 %v439
    %v509 = vunpack.c.l.b16 %v440
    %v510 = vunpack.c.l.b16 %v441
    %v511 = vunpack.c.l.b16 %v442
    %v512 = vunpack.c.l.b16 %v443
    %v513 = vunpack.c.l.b16 %v444
    %v514 = vunpack.c.l.b16 %v445
    %v515 = vunpack.c.l.b16 %v446
    %v516 = vunpack.c.l.b16 %v447
    %v517 = vunpack.c.l.b16 %v448
    %v518 = vunpack.c.l.b16 %v449
    %v519 = vunpack.c.l.b16 %v450
    %v520 = vunpack.c.l.b16 %v451
    %v521 = vunpack.c.l.b16 %v452
    %v522 = vunpack.c.l.b16 %v453
    %v523 = vunpack.c.l.b16 %v454
    %v524 = vunpack.c.l.b16 %v455
    %v525 = vunpack.c.l.b16 %v456
    %v526 = vunpack.c.l.b16 %v457
    %v527 = vunpack.c.l.b16 %v458
    %v528 = vunpack.c.l.b16 %v459
    %v529 = vunpack.c.l.b16 %v460
    %v530 = vunpack.c.l.b16 %v461
    %v531 = vunpack.c.l.b16 %v462
    %v532 = vunpack.c.l.b16 %v463
    %v533 = vunpack.c.l.b16 %v464
    %v534 = vunpack.c.l.b16 %v465
    %v535 = vunpack.c.l.b16 %v466
    %v536 = vunpack.c.l.b16 %v467
    %v537 = vpack.c.b16 %v506, %v505
    %v538 = vpack.c.b16 %v508, %v507
    %v539 = vpack.c.b16 %v510, %v509
    %v540 = vpack.c.b16 %v512, %v511
    %v541 = vpack.c.b16 %v514, %v513
    %v542 = vpack.c.b16 %v516, %v515
    %v543 = vpack.c.b16 %v518, %v517
    %v544 = vpack.c.b16 %v520, %v519
    %v545 = vpack.c.b16 %v522, %v521
    %v546 = vpack.c.b16 %v524, %v523
    %v547 = vpack.c.b16 %v526, %v525
    %v548 = vpack.c.b16 %v528, %v527
    %v549 = vpack.c.b16 %v530, %v529
    %v550 = vpack.c.b16 %v532, %v531
    %v551 = vpack.c.b16 %v534, %v533
    %v552 = vpack.c.b16 %v536, %v535
    %569 = vmatprep.subr.bf16.mxu0 0
    %570 = vmatpush1.bf16.msra.mxu0 %v537
    %571 = vmatprep.subr.bf16.mxu0 0
    %572 = vmatpush1.bf16.msra.mxu0 %v538
    %573 = vmatprep.subr.bf16.mxu0 0
    %574 = vmatpush1.bf16.msra.mxu0 %v539
    %575 = vmatprep.subr.bf16.mxu0 0
    %576 = vmatpush1.bf16.msra.mxu0 %v540
    %577 = vmatprep.subr.bf16.mxu0 0
    %578 = vmatpush1.bf16.msra.mxu0 %v541
    %579 = vmatprep.subr.bf16.mxu0 0
    %580 = vmatpush1.bf16.msra.mxu0 %v542
    %581 = vmatprep.subr.bf16.mxu0 0
    %582 = vmatpush1.bf16.msra.mxu0 %v543
    %583 = vmatprep.subr.bf16.mxu0 0
    %584 = vmatpush1.bf16.msra.mxu0 %v544
    %585 = vmatprep.subr.bf16.mxu0 0
    %586 = vmatpush1.bf16.msra.mxu0 %v545
    %587 = vmatprep.subr.bf16.mxu0 0
    %588 = vmatpush1.bf16.msra.mxu0 %v546
    %589 = vmatprep.subr.bf16.mxu0 0
    %590 = vmatpush1.bf16.msra.mxu0 %v547
    %591 = vmatprep.subr.bf16.mxu0 0
    %592 = vmatpush1.bf16.msra.mxu0 %v548
    %593 = vmatprep.subr.bf16.mxu0 0
    %594 = vmatpush1.bf16.msra.mxu0 %v549
    %595 = vmatprep.subr.bf16.mxu0 0
    %596 = vmatpush1.bf16.msra.mxu0 %v550
    %597 = vmatprep.subr.bf16.mxu0 0
    %598 = vmatpush1.bf16.msra.mxu0 %v551
    %599 = vmatprep.subr.bf16.mxu0 0
    %600 = vmatpush1.bf16.msra.mxu0 %v552
    %601 = vmatprep.mubr.bf16.mxu0 %v435
    %602 = vmatmul.mubr.bf16.gmra.mrb[0].mxu0 %v434
    %v603 = vpop.f32.mrb[0].mxu0
    %v604 = vadd.f32 %v472, %v603
    %v605 = vpop.f32.mrb[0].mxu0
    %v606 = vpop.f32.mrb[0].mxu0
    %v607 = vpop.f32.mrb[0].mxu0
    %608 = vdwg.mxu0
    %609 = vst [vmem:[#allocation8] sm:$0xff] %v604
    // Predicated region
    $region34: #{mlp_forward.1} parent=1 // pred_check
      _
    $region35: #{mlp_forward.1} parent=1 // pred_check_branch
      %611 = sbr.rel (0) target = $region37
    $region36: #{mlp_forward.1} parent=1 // pred_region
      %s613 = ssub.s32 128, 128
      %614 = vsyncadd [#allocation4], %s613
      %s616 = sshll.u32 [#allocation8], 4
      %s617 = int_to_ptr.vmem [resolvable:$true] %s616
      %619 = dma.vmem_to_hbm [thread:$0]  %s617, 128, %s5, [#allocation4]
    $region37: #{mlp_forward.1} parent=1 // pred_fallthru
      _
    // Predicated region
    $region38: #{mlp_forward.1} parent=1 // pred_check
      _
    $region39: #{mlp_forward.1} parent=1 // pred_check_branch
      %621 = sbr.rel (0) target = $region41
    $region40: #{mlp_forward.1} parent=1 // pred_region
      %622 = dma.done [#allocation4], 128
    $region41: #{mlp_forward.1} parent=1 // pred_fallthru
      _
    %623 = vsyncpa [#allocation3], 1
    %624 = vsyncpa [#allocation6], 1
    %625 = vsyncpa [#allocation4], 1

</llo_original>
